<compile_context>
chip_gen: v7x
topology: tpu7x:2x2x1
jax: 0.10.0
libtpu: 0.0.40
codegen_flags: <defaults>
</compile_context>

<pallas_src>
import jax
import jax.numpy as jnp
from jax.experimental import pallas as pl
from jax.experimental.pallas import tpu as pltpu

NEG_SLOPE = 1e-4  # LeakyReLU(negative_slope=0.0001)

LAYER_DIMS_ENC = [64, 32, 16, 8]
LAYER_DIMS_DEC = [8, 16, 32, 64]


def _leaky_relu(x):
    return jnp.where(x >= 0, x, NEG_SLOPE * x)


def _sigmoid(x):
    # Exact sigmoid: exp -> EUP (free slot); the f32 divide has plenty of VPU
    # slack in this HBM-bound kernel.
    return 1.0 / (1.0 + jnp.exp(-x))


# --------------------------------------------------------------------------- #
# Kernel
# --------------------------------------------------------------------------- #
def make_vae_kernel(dims_enc, dims_dec, dpad):
    """Fused forward kernel; layer loop is unrolled at trace time."""
    latent = dims_enc[-1]
    n_enc_hidden = len(dims_enc) - 2          # Linear+LeakyReLU blocks in encoder
    n_dec = len(dims_dec) - 1                 # Linear blocks in decoder
    idx_mu = n_enc_hidden
    idx_lv = n_enc_hidden + 1
    idx_dec0 = n_enc_hidden + 2

    def kernel(x_ref, eps_ref, w_slab_ref, b_slab_ref, out_ref):
        def linear(h, i):
            # Uniform zero-padded (dpad, dpad) matmul + full dpad-wide bias row:
            # static full-slab views, no masked loads, activations stay dpad
            # lanes wide end-to-end (padding lanes remain exactly 0).
            w = w_slab_ref[i]                      # (dpad, dpad), compute dtype
            b = b_slab_ref[i:i + 1, :]             # (1, dpad), f32
            y = jnp.dot(h.astype(w_slab_ref.dtype), w,
                        preferred_element_type=jnp.float32)
            return y + b

        h = x_ref[...]

        # --- encoder: (Linear -> LeakyReLU -> Dropout(p=0)==id) * N
        for i in range(n_enc_hidden):
            h = _leaky_relu(linear(h, i))

        # --- latent heads: two independent zero-padded matmuls (MXU has slack);
        #     lanes >= latent are exactly 0 in both results.
        z_mu = linear(h, idx_mu)
        z_lv = linear(h, idx_lv)

        # --- widen eps (TB, latent) -> (TB, dpad) with an identity-selector
        #     matmul built from iotas: pure lane movement on the MXU, no
        #     narrow-lane VPU masking or concatenation needed.
        rows = jax.lax.broadcasted_iota(jnp.int32, (latent, dpad), 0)
        cols = jax.lax.broadcasted_iota(jnp.int32, (latent, dpad), 1)
        sel = (rows == cols).astype(jnp.float32)
        eps_full = jnp.dot(eps_ref[...].astype(jnp.float32), sel,
                           preferred_element_type=jnp.float32)

        # --- reparameterize on full-width vregs: z = mu + eps * exp(log_var/2)
        #     padding lanes: 0 + 0 * exp(0) == 0, so the decoder sees clean zeros.
        z = z_mu + eps_full * jnp.exp(0.5 * z_lv)

        # --- decoder: Linear -> LeakyReLU ... -> Linear -> Sigmoid
        h = z
        for li in range(n_dec):
            y = linear(h, idx_dec0 + li)
            h = _leaky_relu(y) if li < n_dec - 1 else _sigmoid(y)

        out_ref[...] = h.astype(out_ref.dtype)

    return kernel


# --------------------------------------------------------------------------- #
# Host-side packing / wrapper
# --------------------------------------------------------------------------- #
def pack_params(params, dims_enc, dims_dec, compute_dtype):
    """Pack all layer weights/biases into two zero-padded resident slabs."""
    weights, biases = [], []
    for i in range(len(dims_enc) - 2):
        weights.append(params[f"we{i + 1}"]); biases.append(params[f"be{i + 1}"])
    weights += [params["wmu"], params["wlv"]]
    biases += [params["bmu"], params["blv"]]
    for i in range(len(dims_dec) - 1):
        weights.append(params[f"wd{i + 1}"]); biases.append(params[f"bd{i + 1}"])

    dpad = max(max(w.shape) for w in weights)            # 64 here
    n = len(weights)
    w_slab = jnp.zeros((n, dpad, dpad), jnp.float32)
    b_slab = jnp.zeros((n, dpad), jnp.float32)
    for i, (w, b) in enumerate(zip(weights, biases)):
        w_slab = w_slab.at[i, :w.shape[0], :w.shape[1]].set(w)
        b_slab = b_slab.at[i, :b.shape[1]].set(b[0])
    return w_slab.astype(compute_dtype), b_slab, dpad    # biases stay f32


def _pick_batch_tile(B, max_tb):
    # No artificial splitting: on 1-TC v5e/v6e it only shrinks the DMA chunk
    # and adds per-step overhead.  B > max_tb naturally yields a >=2 program
    # "parallel" grid, which is what v7x needs to shard across its two TCs.
    if B <= max_tb:
        return B                          # single full-array block (always legal)
    return max(8, (max_tb // 8) * 8)      # f32 sublane granularity for tiled blocks


def mask_pred_vae_forward(features, eps, params, *,
                          dims_enc=tuple(LAYER_DIMS_ENC),
                          dims_dec=tuple(LAYER_DIMS_DEC),
                          compute_dtype=jnp.float32,
                          out_dtype=jnp.float32,
                          max_batch_tile=8192):
    B, D_in = features.shape
    latent = dims_enc[-1]
    D_out = dims_dec[-1]
    assert eps.shape == (B, latent)

    w_slab, b_slab, dpad = pack_params(params, dims_enc, dims_dec, compute_dtype)
    assert D_in <= dpad and D_out <= dpad

    TB = _pick_batch_tile(B, max_batch_tile)
    grid = (pl.cdiv(B, TB),)

    row_map = lambda i: (i, 0)            # stream batch-row tiles
    w_map = lambda i: (0, 0, 0)           # weight slab resident across tiles
    b_map = lambda i: (0, 0)              # bias slab resident across tiles

    # Explicit scoped-VMEM budget: double-buffered I/O blocks + resident slabs
    # + headroom for the live (TB, dpad) f32 intermediates.  Floor 32 MiB (fine
    # on every generation), cap 48 MiB so v7x's 64 MiB physical VMEM is safe.
    io_bytes = 2 * TB * (D_in * features.dtype.itemsize
                         + latent * eps.dtype.itemsize
                         + D_out * jnp.dtype(out_dtype).itemsize)
    slab_bytes = 2 * (w_slab.size * w_slab.dtype.itemsize
                      + b_slab.size * b_slab.dtype.itemsize)
    vmem_limit = int(min(max(io_bytes + slab_bytes + (12 << 20), 32 << 20), 48 << 20))

    kernel = make_vae_kernel(list(dims_enc), list(dims_dec), dpad)

    return pl.pallas_call(
        kernel,
        out_shape=jax.ShapeDtypeStruct((B, D_out), out_dtype),
        grid=grid,
        in_specs=[
            pl.BlockSpec((TB, D_in), row_map),
            pl.BlockSpec((TB, latent), row_map),
            pl.BlockSpec(w_slab.shape, w_map),
            pl.BlockSpec(b_slab.shape, b_map),
        ],
        out_specs=pl.BlockSpec((TB, D_out), row_map),
        compiler_params=pltpu.CompilerParams(
            dimension_semantics=("parallel",),
            vmem_limit_bytes=vmem_limit),
    )(features, eps, w_slab, b_slab)


# --------------------------------------------------------------------------- #
# Parameters & pure-JAX reference
# --------------------------------------------------------------------------- #
def init_params(key):
    """Deterministic synthetic parameters (not a checkpoint)."""
    def lin(k, din, dout):
        kw, kb = jax.random.split(k)
        scale = 1.0 / jnp.sqrt(din)
        w = jax.random.uniform(kw, (din, dout), jnp.float32, -scale, scale)
        b = jax.random.uniform(kb, (1, dout), jnp.float32, -scale, scale)
        return w, b

    e0, e1, e2, e3 = LAYER_DIMS_ENC
    d0, d1, d2, d3 = LAYER_DIMS_DEC
    keys = jax.random.split(key, 7)
    params = {}
    params["we1"], params["be1"] = lin(keys[0], e0, e1)
    params["we2"], params["be2"] = lin(keys[1], e1, e2)
    params["wmu"], params["bmu"] = lin(keys[2], e2, e3)
    params["wlv"], params["blv"] = lin(keys[3], e2, e3)
    params["wd1"], params["bd1"] = lin(keys[4], d0, d1)
    params["wd2"], params["bd2"] = lin(keys[5], d1, d2)
    params["wd3"], params["bd3"] = lin(keys[6], d2, d3)
    return params


def reference_forward(features, eps, p):
    """Pure-JAX f32 reference mirroring the PyTorch forward."""
    lrelu = lambda x: jnp.where(x >= 0, x, NEG_SLOPE * x)
    h = lrelu(features @ p["we1"] + p["be1"])
    h = lrelu(h @ p["we2"] + p["be2"])
    z_mu = h @ p["wmu"] + p["bmu"]
    z_lv = h @ p["wlv"] + p["blv"]
    z = z_mu + eps * jnp.exp(z_lv / 2.0)
    d = lrelu(z @ p["wd1"] + p["bd1"])
    d = lrelu(d @ p["wd2"] + p["bd2"])
    logits = d @ p["wd3"] + p["bd3"]
    return 1.0 / (1.0 + jnp.exp(-logits))


if __name__ == "__main__":
    B = 16  # small demo batch
    key = jax.random.PRNGKey(0)
    k_feat, k_eps, k_par = jax.random.split(key, 3)

    features = jax.random.normal(k_feat, (B, LAYER_DIMS_ENC[0]), jnp.float32)
    eps = jax.random.normal(k_eps, (B, LAYER_DIMS_ENC[-1]), jnp.float32)
    params = init_params(k_par)

    ref = reference_forward(features, eps, params)

    # 1) Default path: f32 compute, f32 output, single-program grid (B <= tile cap).
    out_f32 = jax.block_until_ready(mask_pred_vae_forward(features, eps, params))
    assert out_f32.shape == (B, LAYER_DIMS_DEC[-1])
    assert jnp.allclose(out_f32, ref, atol=2e-3, rtol=0.0), "f32 kernel mismatch"

    # 2) Tiled path (forces grid=(2,)): exercises the multi-program / streaming code.
    out_tiled = jax.block_until_ready(
        mask_pred_vae_forward(features, eps, params, max_batch_tile=8))
    assert jnp.allclose(out_tiled, ref, atol=2e-3, rtol=0.0), "tiled kernel mismatch"

    # 3) Opt-in throughput path: bf16 compute + bf16 output (HBM-byte saver).
    out_bf16 = jax.block_until_ready(
        mask_pred_vae_forward(features, eps, params,
                              compute_dtype=jnp.bfloat16, out_dtype=jnp.bfloat16))
    assert out_bf16.shape == (B, LAYER_DIMS_DEC[-1])
    assert jnp.allclose(out_bf16.astype(jnp.float32), ref, atol=4e-2, rtol=0.0), \
        "bf16 kernel mismatch"

    print("KERNEL_OK")
</pallas_src>

<mosaic_0001>
module attributes {stable_mosaic.version = 11 : i64} {
  func.func @kernel(%arg0: i32, %arg1: memref<16x64xf32, #tpu.memory_space<vmem>>, %arg2: memref<16x8xf32, #tpu.memory_space<vmem>>, %arg3: memref<7x64x64xf32, #tpu.memory_space<vmem>>, %arg4: memref<7x64xf32, #tpu.memory_space<vmem>>, %arg5: memref<16x64xf32, #tpu.memory_space<vmem>>) attributes {dimension_semantics = [#tpu.dimension_semantics<parallel>], iteration_bounds = array<i64: 1>, scalar_prefetch = 0 : i64, scratch_operands = 0 : i64, tpu.core_type = #tpu.core_type<tc>, window_params = [{transform_indices = @transform_0, window_bounds = array<i64: 16, 64>}, {transform_indices = @transform_1, window_bounds = array<i64: 16, 8>}, {pipeline_mode = #tpu.pipeline_mode<synchronous>, transform_indices = @transform_2, window_bounds = array<i64: 7, 64, 64>}, {pipeline_mode = #tpu.pipeline_mode<synchronous>, transform_indices = @transform_3, window_bounds = array<i64: 7, 64>}, {transform_indices = @transform_4, window_bounds = array<i64: 16, 64>}]} {
    %c0 = arith.constant 0 : index
    %c0_0 = arith.constant 0 : index
    %0 = vector.load %arg1[%c0, %c0_0] : memref<16x64xf32, #tpu.memory_space<vmem>>, vector<16x64xf32>
    %c0_1 = arith.constant 0 : index
    %c0_2 = arith.constant 0 : index
    %c0_3 = arith.constant 0 : index
    %1 = vector.load %arg3[%c0_1, %c0_2, %c0_3] : memref<7x64x64xf32, #tpu.memory_space<vmem>>, vector<1x64x64xf32>
    %2 = vector.shape_cast %1 : vector<1x64x64xf32> to vector<64x64xf32>
    %c0_4 = arith.constant 0 : index
    %c0_5 = arith.constant 0 : index
    %3 = vector.load %arg4[%c0_4, %c0_5] : memref<7x64xf32, #tpu.memory_space<vmem>>, vector<1x64xf32>
    %cst = arith.constant dense<0.000000e+00> : vector<16x64xf32>
    %4 = tpu.matmul %0, %2, %cst {dimension_numbers = #tpu.dot_dimension_numbers<[1], [0], [0], [1], [0, 0, 1, 1], [], []>} : vector<16x64xf32>, vector<64x64xf32>, vector<16x64xf32> -> vector<16x64xf32>
    %5 = vector.broadcast %3 : vector<1x64xf32> to vector<16x64xf32>
    %6 = arith.addf %4, %5 : vector<16x64xf32>
    %cst_6 = arith.constant 0.000000e+00 : f32
    %7 = vector.broadcast %cst_6 : f32 to vector<16x64xf32>
    %8 = arith.cmpf oge, %6, %7 : vector<16x64xf32>
    %cst_7 = arith.constant 9.99999974E-5 : f32
    %9 = vector.broadcast %cst_7 : f32 to vector<16x64xf32>
    %10 = arith.mulf %9, %6 : vector<16x64xf32>
    %11 = arith.select %8, %6, %10 : vector<16x64xi1>, vector<16x64xf32>
    %c1 = arith.constant 1 : index
    %c0_8 = arith.constant 0 : index
    %c0_9 = arith.constant 0 : index
    %12 = vector.load %arg3[%c1, %c0_8, %c0_9] : memref<7x64x64xf32, #tpu.memory_space<vmem>>, vector<1x64x64xf32>
    %13 = vector.shape_cast %12 : vector<1x64x64xf32> to vector<64x64xf32>
    %c1_10 = arith.constant 1 : index
    %c0_11 = arith.constant 0 : index
    %14 = vector.load %arg4[%c1_10, %c0_11] : memref<7x64xf32, #tpu.memory_space<vmem>>, vector<1x64xf32>
    %cst_12 = arith.constant dense<0.000000e+00> : vector<16x64xf32>
    %15 = tpu.matmul %11, %13, %cst_12 {dimension_numbers = #tpu.dot_dimension_numbers<[1], [0], [0], [1], [0, 0, 1, 1], [], []>} : vector<16x64xf32>, vector<64x64xf32>, vector<16x64xf32> -> vector<16x64xf32>
    %16 = vector.broadcast %14 : vector<1x64xf32> to vector<16x64xf32>
    %17 = arith.addf %15, %16 : vector<16x64xf32>
    %cst_13 = arith.constant 0.000000e+00 : f32
    %18 = vector.broadcast %cst_13 : f32 to vector<16x64xf32>
    %19 = arith.cmpf oge, %17, %18 : vector<16x64xf32>
    %cst_14 = arith.constant 9.99999974E-5 : f32
    %20 = vector.broadcast %cst_14 : f32 to vector<16x64xf32>
    %21 = arith.mulf %20, %17 : vector<16x64xf32>
    %22 = arith.select %19, %17, %21 : vector<16x64xi1>, vector<16x64xf32>
    %c2 = arith.constant 2 : index
    %c0_15 = arith.constant 0 : index
    %c0_16 = arith.constant 0 : index
    %23 = vector.load %arg3[%c2, %c0_15, %c0_16] : memref<7x64x64xf32, #tpu.memory_space<vmem>>, vector<1x64x64xf32>
    %24 = vector.shape_cast %23 : vector<1x64x64xf32> to vector<64x64xf32>
    %c2_17 = arith.constant 2 : index
    %c0_18 = arith.constant 0 : index
    %25 = vector.load %arg4[%c2_17, %c0_18] : memref<7x64xf32, #tpu.memory_space<vmem>>, vector<1x64xf32>
    %cst_19 = arith.constant dense<0.000000e+00> : vector<16x64xf32>
    %26 = tpu.matmul %22, %24, %cst_19 {dimension_numbers = #tpu.dot_dimension_numbers<[1], [0], [0], [1], [0, 0, 1, 1], [], []>} : vector<16x64xf32>, vector<64x64xf32>, vector<16x64xf32> -> vector<16x64xf32>
    %27 = vector.broadcast %25 : vector<1x64xf32> to vector<16x64xf32>
    %28 = arith.addf %26, %27 : vector<16x64xf32>
    %c3 = arith.constant 3 : index
    %c0_20 = arith.constant 0 : index
    %c0_21 = arith.constant 0 : index
    %29 = vector.load %arg3[%c3, %c0_20, %c0_21] : memref<7x64x64xf32, #tpu.memory_space<vmem>>, vector<1x64x64xf32>
    %30 = vector.shape_cast %29 : vector<1x64x64xf32> to vector<64x64xf32>
    %c3_22 = arith.constant 3 : index
    %c0_23 = arith.constant 0 : index
    %31 = vector.load %arg4[%c3_22, %c0_23] : memref<7x64xf32, #tpu.memory_space<vmem>>, vector<1x64xf32>
    %cst_24 = arith.constant dense<0.000000e+00> : vector<16x64xf32>
    %32 = tpu.matmul %22, %30, %cst_24 {dimension_numbers = #tpu.dot_dimension_numbers<[1], [0], [0], [1], [0, 0, 1, 1], [], []>} : vector<16x64xf32>, vector<64x64xf32>, vector<16x64xf32> -> vector<16x64xf32>
    %33 = vector.broadcast %31 : vector<1x64xf32> to vector<16x64xf32>
    %34 = arith.addf %32, %33 : vector<16x64xf32>
    %35 = tpu.iota {dimensions = array<i32: 0>} : vector<8x64xi32>
    %36 = tpu.iota {dimensions = array<i32: 1>} : vector<8x64xi32>
    %37 = arith.cmpi eq, %35, %36 : vector<8x64xi32>
    %38 = arith.extui %37 : vector<8x64xi1> to vector<8x64xi32>
    %39 = arith.sitofp %38 : vector<8x64xi32> to vector<8x64xf32>
    %c0_25 = arith.constant 0 : index
    %c0_26 = arith.constant 0 : index
    %40 = vector.load %arg2[%c0_25, %c0_26] : memref<16x8xf32, #tpu.memory_space<vmem>>, vector<16x8xf32>
    %cst_27 = arith.constant dense<0.000000e+00> : vector<16x64xf32>
    %41 = tpu.matmul %40, %39, %cst_27 {dimension_numbers = #tpu.dot_dimension_numbers<[1], [0], [0], [1], [0, 0, 1, 1], [], []>} : vector<16x8xf32>, vector<8x64xf32>, vector<16x64xf32> -> vector<16x64xf32>
    %cst_28 = arith.constant 5.000000e-01 : f32
    %42 = vector.broadcast %cst_28 : f32 to vector<16x64xf32>
    %43 = arith.mulf %42, %34 : vector<16x64xf32>
    %44 = math.exp %43 : vector<16x64xf32>
    %45 = arith.mulf %41, %44 : vector<16x64xf32>
    %46 = arith.addf %28, %45 : vector<16x64xf32>
    %c4 = arith.constant 4 : index
    %c0_29 = arith.constant 0 : index
    %c0_30 = arith.constant 0 : index
    %47 = vector.load %arg3[%c4, %c0_29, %c0_30] : memref<7x64x64xf32, #tpu.memory_space<vmem>>, vector<1x64x64xf32>
    %48 = vector.shape_cast %47 : vector<1x64x64xf32> to vector<64x64xf32>
    %c4_31 = arith.constant 4 : index
    %c0_32 = arith.constant 0 : index
    %49 = vector.load %arg4[%c4_31, %c0_32] : memref<7x64xf32, #tpu.memory_space<vmem>>, vector<1x64xf32>
    %cst_33 = arith.constant dense<0.000000e+00> : vector<16x64xf32>
    %50 = tpu.matmul %46, %48, %cst_33 {dimension_numbers = #tpu.dot_dimension_numbers<[1], [0], [0], [1], [0, 0, 1, 1], [], []>} : vector<16x64xf32>, vector<64x64xf32>, vector<16x64xf32> -> vector<16x64xf32>
    %51 = vector.broadcast %49 : vector<1x64xf32> to vector<16x64xf32>
    %52 = arith.addf %50, %51 : vector<16x64xf32>
    %cst_34 = arith.constant 0.000000e+00 : f32
    %53 = vector.broadcast %cst_34 : f32 to vector<16x64xf32>
    %54 = arith.cmpf oge, %52, %53 : vector<16x64xf32>
    %cst_35 = arith.constant 9.99999974E-5 : f32
    %55 = vector.broadcast %cst_35 : f32 to vector<16x64xf32>
    %56 = arith.mulf %55, %52 : vector<16x64xf32>
    %57 = arith.select %54, %52, %56 : vector<16x64xi1>, vector<16x64xf32>
    %c5 = arith.constant 5 : index
    %c0_36 = arith.constant 0 : index
    %c0_37 = arith.constant 0 : index
    %58 = vector.load %arg3[%c5, %c0_36, %c0_37] : memref<7x64x64xf32, #tpu.memory_space<vmem>>, vector<1x64x64xf32>
    %59 = vector.shape_cast %58 : vector<1x64x64xf32> to vector<64x64xf32>
    %c5_38 = arith.constant 5 : index
    %c0_39 = arith.constant 0 : index
    %60 = vector.load %arg4[%c5_38, %c0_39] : memref<7x64xf32, #tpu.memory_space<vmem>>, vector<1x64xf32>
    %cst_40 = arith.constant dense<0.000000e+00> : vector<16x64xf32>
    %61 = tpu.matmul %57, %59, %cst_40 {dimension_numbers = #tpu.dot_dimension_numbers<[1], [0], [0], [1], [0, 0, 1, 1], [], []>} : vector<16x64xf32>, vector<64x64xf32>, vector<16x64xf32> -> vector<16x64xf32>
    %62 = vector.broadcast %60 : vector<1x64xf32> to vector<16x64xf32>
    %63 = arith.addf %61, %62 : vector<16x64xf32>
    %cst_41 = arith.constant 0.000000e+00 : f32
    %64 = vector.broadcast %cst_41 : f32 to vector<16x64xf32>
    %65 = arith.cmpf oge, %63, %64 : vector<16x64xf32>
    %cst_42 = arith.constant 9.99999974E-5 : f32
    %66 = vector.broadcast %cst_42 : f32 to vector<16x64xf32>
    %67 = arith.mulf %66, %63 : vector<16x64xf32>
    %68 = arith.select %65, %63, %67 : vector<16x64xi1>, vector<16x64xf32>
    %c6 = arith.constant 6 : index
    %c0_43 = arith.constant 0 : index
    %c0_44 = arith.constant 0 : index
    %69 = vector.load %arg3[%c6, %c0_43, %c0_44] : memref<7x64x64xf32, #tpu.memory_space<vmem>>, vector<1x64x64xf32>
    %70 = vector.shape_cast %69 : vector<1x64x64xf32> to vector<64x64xf32>
    %c6_45 = arith.constant 6 : index
    %c0_46 = arith.constant 0 : index
    %71 = vector.load %arg4[%c6_45, %c0_46] : memref<7x64xf32, #tpu.memory_space<vmem>>, vector<1x64xf32>
    %cst_47 = arith.constant dense<0.000000e+00> : vector<16x64xf32>
    %72 = tpu.matmul %68, %70, %cst_47 {dimension_numbers = #tpu.dot_dimension_numbers<[1], [0], [0], [1], [0, 0, 1, 1], [], []>} : vector<16x64xf32>, vector<64x64xf32>, vector<16x64xf32> -> vector<16x64xf32>
    %73 = vector.broadcast %71 : vector<1x64xf32> to vector<16x64xf32>
    %74 = arith.addf %72, %73 : vector<16x64xf32>
    %cst_48 = arith.constant 0.000000e+00 : f32
    %75 = vector.broadcast %cst_48 : f32 to vector<16x64xf32>
    %76 = arith.subf %75, %74 : vector<16x64xf32>
    %77 = math.exp %76 : vector<16x64xf32>
    %cst_49 = arith.constant 1.000000e+00 : f32
    %78 = vector.broadcast %cst_49 : f32 to vector<16x64xf32>
    %79 = arith.addf %78, %77 : vector<16x64xf32>
    %cst_50 = arith.constant 1.000000e+00 : f32
    %80 = vector.broadcast %cst_50 : f32 to vector<16x64xf32>
    %81 = arith.divf %80, %79 : vector<16x64xf32>
    %c0_51 = arith.constant 0 : index
    %c0_52 = arith.constant 0 : index
    %82 = vector.load %arg5[%c0_51, %c0_52] : memref<16x64xf32, #tpu.memory_space<vmem>>, vector<16x64xf32>
    tpu.vector_store %arg5[%c0_51, %c0_52], %81 {strides = array<i32>} : memref<16x64xf32, #tpu.memory_space<vmem>>, vector<16x64xf32>,
    return
  }
  func.func @transform_0(%arg0: i32) -> (i32, i32) {
    %c0_i32 = arith.constant 0 : i32
    %c0_i32_0 = arith.constant 0 : i32
    return %arg0, %c0_i32 : i32, i32
  }
  func.func @transform_1(%arg0: i32) -> (i32, i32) {
    %c0_i32 = arith.constant 0 : i32
    %c0_i32_0 = arith.constant 0 : i32
    return %arg0, %c0_i32 : i32, i32
  }
  func.func @transform_2(%arg0: i32) -> (i32, i32, i32) {
    %c0_i32 = arith.constant 0 : i32
    %c0_i32_0 = arith.constant 0 : i32
    %c0_i32_1 = arith.constant 0 : i32
    %c0_i32_2 = arith.constant 0 : i32
    return %c0_i32, %c0_i32_0, %c0_i32_1 : i32, i32, i32
  }
  func.func @transform_3(%arg0: i32) -> (i32, i32) {
    %c0_i32 = arith.constant 0 : i32
    %c0_i32_0 = arith.constant 0 : i32
    %c0_i32_1 = arith.constant 0 : i32
    return %c0_i32, %c0_i32_0 : i32, i32
  }
  func.func @transform_4(%arg0: i32) -> (i32, i32) {
    %c0_i32 = arith.constant 0 : i32
    %c0_i32_0 = arith.constant 0 : i32
    return %arg0, %c0_i32 : i32, i32
  }
}

</mosaic_0001>

<llo_original>
// kernel: tpu_custom_call.1
$region0: #{tpu_custom_call.1}
  #allocation0 [shape = 'u32[]', space=smem, size = 0x4, offset = 0x4, fixed_abs, tag = 'smem constant byte address 0x4 - core index']
  #allocation1 [shape = 'u32[144,128]{1,0:T(1,128)}', space=vmem, size = 0x12000, scoped, tag = 'internal scratch']
  %s0 = inlined_call_operand.vmem [shape: f32[16,64], index: 0, kind: input, shape index: {}]
  %s1 = inlined_call_operand.vmem [shape: f32[16,8], index: 1, kind: input, shape index: {}]
  %s2 = inlined_call_operand.hbm [shape: f32[7,64,64], index: 2, kind: input, shape index: {}]
  %s3 = inlined_call_operand.vmem [shape: f32[7,64], index: 3, kind: input, shape index: {}]
  %s4 = inlined_call_operand.hbm [shape: f32[16,64], index: 4, kind: output, shape index: {}]
  %s5 = sld [smem:[#allocation0]]
  $region30: #{tpu_custom_call.1} parent=0
    _
  %s7 = ssub.s32 1, %s5
  %s8 = scalar_select 0, %s7, %s5
  $region1: #{tpu_custom_call.1} parent=0
    #allocation2 [shape = 'u8[229376]{0}', space=vmem, size = 0x38000, scoped, tag = 'input window, operand 2, single buffered']
    #allocation3 [shape = 's32[1]{0}', space=sflag, size = 0x4, scoped, tag = 'scoped memory for tpu_custom_call.1']
    #allocation4 [shape = 's32[1]{0}', space=sflag, size = 0x4, scoped, tag = 'scoped memory for tpu_custom_call.1']
    #allocation5 [shape = 'u8[8192]{0}', space=vmem, size = 0x2000, scoped, tag = 'output window, operand 0, single buffered']
    %9 = vsyncpa [#allocation3], 0
    %10 = vsyncpa [#allocation4], 0
    // Predicated region
    $region2: #{tpu_custom_call.1} parent=1 // pred_check
      _
    $region3: #{tpu_custom_call.1} parent=1 // pred_check_branch
      %12 = sbr.rel (0) target = $region5
    $region4: #{tpu_custom_call.1} parent=1 // pred_region
      _
    $region5: #{tpu_custom_call.1} parent=1 // pred_fallthru
      _
    // Predicated region
    $region6: #{tpu_custom_call.1} parent=1 // pred_check
      _
    $region7: #{tpu_custom_call.1} parent=1 // pred_check_branch
      %14 = sbr.rel (0) target = $region9
    $region8: #{tpu_custom_call.1} parent=1 // pred_region
      _
    $region9: #{tpu_custom_call.1} parent=1 // pred_fallthru
      _
    // Predicated region
    $region10: #{tpu_custom_call.1} parent=1 // pred_check
      _
    $region11: #{tpu_custom_call.1} parent=1 // pred_check_branch
      %16 = sbr.rel (0) target = $region13
    $region12: #{tpu_custom_call.1} parent=1 // pred_region
      %s18 = ssub.s32 7168, 7168
      %19 = vsyncadd [#allocation3], %s18
      %s20 = sshll.u32 [#allocation2], 4
      %s21 = int_to_ptr.vmem [resolvable:$true] %s20
      %26 = dma.hbm_to_vmem [thread:$0]  %s2, 7168, %s21, [#allocation3], 128, 128, 8
    $region13: #{tpu_custom_call.1} parent=1 // pred_fallthru
      _
    // Predicated region
    $region14: #{tpu_custom_call.1} parent=1 // pred_check
      _
    $region15: #{tpu_custom_call.1} parent=1 // pred_check_branch
      %28 = sbr.rel (0) target = $region17
    $region16: #{tpu_custom_call.1} parent=1 // pred_region
      _
    $region17: #{tpu_custom_call.1} parent=1 // pred_fallthru
      _
    // Predicated region
    $region18: #{tpu_custom_call.1} parent=1 // pred_check
      _
    $region19: #{tpu_custom_call.1} parent=1 // pred_check_branch
      %30 = sbr.rel (0) target = $region21
    $region20: #{tpu_custom_call.1} parent=1 // pred_region
      %31 = dma.done [#allocation3], 7168
    $region21: #{tpu_custom_call.1} parent=1 // pred_fallthru
      _
    %v32 = vld [vmem:[%s0] sm:$0xff]
    %v33 = vld [vmem:[%s0 + $0x8] sm:$0xff]
    %v34 = vld [vmem:[#allocation2] sm:$0xff]
    %v35 = vld [vmem:[#allocation2 + $0x8] sm:$0xff]
    %v36 = vld [vmem:[#allocation2 + $0x10] sm:$0xff]
    %v37 = vld [vmem:[#allocation2 + $0x18] sm:$0xff]
    %v38 = vld [vmem:[#allocation2 + $0x20] sm:$0xff]
    %v39 = vld [vmem:[#allocation2 + $0x28] sm:$0xff]
    %v40 = vld [vmem:[#allocation2 + $0x30] sm:$0xff]
    %v41 = vld [vmem:[#allocation2 + $0x38] sm:$0xff]
    %v42 = vld [vmem:[%s3] sm:$0x1]
    %v43 = vlaneseq
    %v44 = vshrl.u32 %v43, 7
    %v45 = vsub.s32 0, %v44
    %v46 = vrot.slane %v42, %v45
    %vm47 = vcmask 523264
    %v49 = vsel %vm47, %v32, 0
    %v52 = vsel %vm47, %v33, 0
    %54 = vmatprep.subr.mxu0 0.0
    %55 = vmatpush1.msra.mxu0 %v34
    %56 = vmatprep.subr.mxu0 0.0
    %57 = vmatpush1.msra.mxu0 %v35
    %58 = vmatprep.subr.mxu0 0.0
    %59 = vmatpush1.msra.mxu0 %v36
    %60 = vmatprep.subr.mxu0 0.0
    %61 = vmatpush1.msra.mxu0 %v37
    %62 = vmatprep.subr.mxu0 0.0
    %63 = vmatpush1.msra.mxu0 %v38
    %64 = vmatprep.subr.mxu0 0.0
    %65 = vmatpush1.msra.mxu0 %v39
    %66 = vmatprep.subr.mxu0 0.0
    %67 = vmatpush1.msra.mxu0 %v40
    %68 = vmatprep.subr.mxu0 0.0
    %69 = vmatpush1.msra.mxu0 %v41
    %70 = vmatprep.subr.mxu0 0.0
    %71 = vmatpush1.msra.mxu0 0.0
    %72 = vmatprep.subr.mxu0 0.0
    %73 = vmatpush1.msra.mxu0 0.0
    %74 = vmatprep.subr.mxu0 0.0
    %75 = vmatpush1.msra.mxu0 0.0
    %76 = vmatprep.subr.mxu0 0.0
    %77 = vmatpush1.msra.mxu0 0.0
    %78 = vmatprep.subr.mxu0 0.0
    %79 = vmatpush1.msra.mxu0 0.0
    %80 = vmatprep.subr.mxu0 0.0
    %81 = vmatpush1.msra.mxu0 0.0
    %82 = vmatprep.subr.mxu0 0.0
    %83 = vmatpush1.msra.mxu0 0.0
    %84 = vmatprep.subr.mxu0 0.0
    %85 = vmatpush1.msra.mxu0 0.0
    %86 = vmatprep.subr.mxu0 0.0
    %87 = vmatpush1.msra.mxu0 0.0
    %88 = vmatprep.subr.mxu0 0.0
    %89 = vmatpush1.msra.mxu0 0.0
    %90 = vmatprep.subr.mxu0 0.0
    %91 = vmatpush1.msra.mxu0 0.0
    %92 = vmatprep.subr.mxu0 0.0
    %93 = vmatpush1.msra.mxu0 0.0
    %94 = vmatprep.subr.mxu0 0.0
    %95 = vmatpush1.msra.mxu0 0.0
    %96 = vmatprep.subr.mxu0 0.0
    %97 = vmatpush1.msra.mxu0 0.0
    %98 = vmatprep.subr.mxu0 0.0
    %99 = vmatpush1.msra.mxu0 0.0
    %100 = vmatprep.subr.mxu0 0.0
    %101 = vmatpush1.msra.mxu0 0.0
    %102 = vmatprep.subr.mxu0 0.0
    %103 = vmatpush1.msra.mxu0 0.0
    %104 = vmatprep.subr.mxu0 0.0
    %105 = vmatpush1.msra.mxu0 0.0
    %106 = vmatprep.subr.mxu0 0.0
    %107 = vmatpush1.msra.mxu0 0.0
    %108 = vmatprep.subr.mxu0 0.0
    %109 = vmatpush1.msra.mxu0 0.0
    %110 = vmatprep.subr.mxu0 0.0
    %111 = vmatpush1.msra.mxu0 0.0
    %112 = vmatprep.subr.mxu0 0.0
    %113 = vmatpush1.msra.mxu0 0.0
    %114 = vmatprep.subr.mxu0 0.0
    %115 = vmatpush1.msra.mxu0 0.0
    %116 = vmatprep.subr.mxu0 0.0
    %117 = vmatpush1.msra.mxu0 0.0
    %118 = vmatprep.mubr.f32.mxu0 0.0
    %119 = vmatmul.mubr.f32.gmra.mrb[0].mxu0 %v49
    %v120 = vpop.f32.mrb[0].mxu0
    %v121 = vadd.f32 %v46, %v120
    %v122 = vpop.f32.mrb[0].mxu0
    %123 = vmatprep.mubr.f32.mxu0 0.0
    %124 = vmatmul.mubr.f32.gmra.mrb[0].mxu0 %v52
    %v125 = vpop.f32.mrb[0].mxu0
    %v126 = vadd.f32 %v46, %v125
    %v127 = vpop.f32.mrb[0].mxu0
    %128 = vdwg.mxu0
    %vm129 = vcmp.ge.f32.partialorder %v121, 0.0
    %vm130 = vcmp.ge.f32.partialorder %v126, 0.0
    %v131 = vmul.f32 %v121, 0.0001
    %v132 = vmul.f32 %v126, 0.0001
    %v133 = vsel %vm129, %v121, %v131
    %v134 = vsel %vm130, %v126, %v132
    %s135 = scalar_lea.vmem [#allocation2], 64
    %v136 = vld [vmem:[%s135] sm:$0xff]
    %v137 = vld [vmem:[%s135 + $0x8] sm:$0xff]
    %v138 = vld [vmem:[%s135 + $0x10] sm:$0xff]
    %v139 = vld [vmem:[%s135 + $0x18] sm:$0xff]
    %v140 = vld [vmem:[%s135 + $0x20] sm:$0xff]
    %v141 = vld [vmem:[%s135 + $0x28] sm:$0xff]
    %v142 = vld [vmem:[%s135 + $0x30] sm:$0xff]
    %v143 = vld [vmem:[%s135 + $0x38] sm:$0xff]
    %v144 = vld [vmem:[%s3 + $0x1] sm:$0x1]
    %v145 = vlaneseq
    %v146 = vshrl.u32 %v145, 7
    %v147 = vsub.s32 0, %v146
    %v148 = vrot.slane %v144, %v147
    %v150 = vsel %vm47, %v133, 0
    %v153 = vsel %vm47, %v134, 0
    %155 = vmatprep.subr.mxu0 0.0
    %156 = vmatpush1.msra.mxu0 %v136
    %157 = vmatprep.subr.mxu0 0.0
    %158 = vmatpush1.msra.mxu0 %v137
    %159 = vmatprep.subr.mxu0 0.0
    %160 = vmatpush1.msra.mxu0 %v138
    %161 = vmatprep.subr.mxu0 0.0
    %162 = vmatpush1.msra.mxu0 %v139
    %163 = vmatprep.subr.mxu0 0.0
    %164 = vmatpush1.msra.mxu0 %v140
    %165 = vmatprep.subr.mxu0 0.0
    %166 = vmatpush1.msra.mxu0 %v141
    %167 = vmatprep.subr.mxu0 0.0
    %168 = vmatpush1.msra.mxu0 %v142
    %169 = vmatprep.subr.mxu0 0.0
    %170 = vmatpush1.msra.mxu0 %v143
    %171 = vmatprep.subr.mxu0 0.0
    %172 = vmatpush1.msra.mxu0 0.0
    %173 = vmatprep.subr.mxu0 0.0
    %174 = vmatpush1.msra.mxu0 0.0
    %175 = vmatprep.subr.mxu0 0.0
    %176 = vmatpush1.msra.mxu0 0.0
    %177 = vmatprep.subr.mxu0 0.0
    %178 = vmatpush1.msra.mxu0 0.0
    %179 = vmatprep.subr.mxu0 0.0
    %180 = vmatpush1.msra.mxu0 0.0
    %181 = vmatprep.subr.mxu0 0.0
    %182 = vmatpush1.msra.mxu0 0.0
    %183 = vmatprep.subr.mxu0 0.0
    %184 = vmatpush1.msra.mxu0 0.0
    %185 = vmatprep.subr.mxu0 0.0
    %186 = vmatpush1.msra.mxu0 0.0
    %187 = vmatprep.subr.mxu0 0.0
    %188 = vmatpush1.msra.mxu0 0.0
    %189 = vmatprep.subr.mxu0 0.0
    %190 = vmatpush1.msra.mxu0 0.0
    %191 = vmatprep.subr.mxu0 0.0
    %192 = vmatpush1.msra.mxu0 0.0
    %193 = vmatprep.subr.mxu0 0.0
    %194 = vmatpush1.msra.mxu0 0.0
    %195 = vmatprep.subr.mxu0 0.0
    %196 = vmatpush1.msra.mxu0 0.0
    %197 = vmatprep.subr.mxu0 0.0
    %198 = vmatpush1.msra.mxu0 0.0
    %199 = vmatprep.subr.mxu0 0.0
    %200 = vmatpush1.msra.mxu0 0.0
    %201 = vmatprep.subr.mxu0 0.0
    %202 = vmatpush1.msra.mxu0 0.0
    %203 = vmatprep.subr.mxu0 0.0
    %204 = vmatpush1.msra.mxu0 0.0
    %205 = vmatprep.subr.mxu0 0.0
    %206 = vmatpush1.msra.mxu0 0.0
    %207 = vmatprep.subr.mxu0 0.0
    %208 = vmatpush1.msra.mxu0 0.0
    %209 = vmatprep.subr.mxu0 0.0
    %210 = vmatpush1.msra.mxu0 0.0
    %211 = vmatprep.subr.mxu0 0.0
    %212 = vmatpush1.msra.mxu0 0.0
    %213 = vmatprep.subr.mxu0 0.0
    %214 = vmatpush1.msra.mxu0 0.0
    %215 = vmatprep.subr.mxu0 0.0
    %216 = vmatpush1.msra.mxu0 0.0
    %217 = vmatprep.subr.mxu0 0.0
    %218 = vmatpush1.msra.mxu0 0.0
    %219 = vmatprep.mubr.f32.mxu0 0.0
    %220 = vmatmul.mubr.f32.gmra.mrb[0].mxu0 %v150
    %v221 = vpop.f32.mrb[0].mxu0
    %v222 = vadd.f32 %v148, %v221
    %v223 = vpop.f32.mrb[0].mxu0
    %224 = vmatprep.mubr.f32.mxu0 0.0
    %225 = vmatmul.mubr.f32.gmra.mrb[0].mxu0 %v153
    %v226 = vpop.f32.mrb[0].mxu0
    %v227 = vadd.f32 %v148, %v226
    %v228 = vpop.f32.mrb[0].mxu0
    %229 = vdwg.mxu0
    %vm230 = vcmp.ge.f32.partialorder %v222, 0.0
    %vm231 = vcmp.ge.f32.partialorder %v227, 0.0
    %v232 = vmul.f32 %v222, 0.0001
    %v233 = vmul.f32 %v227, 0.0001
    %v234 = vsel %vm230, %v222, %v232
    %v235 = vsel %vm231, %v227, %v233
    %s236 = scalar_lea.vmem [#allocation2], 128
    %v237 = vld [vmem:[%s236] sm:$0xff]
    %v238 = vld [vmem:[%s236 + $0x8] sm:$0xff]
    %v239 = vld [vmem:[%s236 + $0x10] sm:$0xff]
    %v240 = vld [vmem:[%s236 + $0x18] sm:$0xff]
    %v241 = vld [vmem:[%s236 + $0x20] sm:$0xff]
    %v242 = vld [vmem:[%s236 + $0x28] sm:$0xff]
    %v243 = vld [vmem:[%s236 + $0x30] sm:$0xff]
    %v244 = vld [vmem:[%s236 + $0x38] sm:$0xff]
    %v245 = vld [vmem:[%s3 + $0x2] sm:$0x1]
    %v246 = vlaneseq
    %v247 = vshrl.u32 %v246, 7
    %v248 = vsub.s32 0, %v247
    %v249 = vrot.slane %v245, %v248
    %v251 = vsel %vm47, %v234, 0
    %v254 = vsel %vm47, %v235, 0
    %256 = vmatprep.subr.mxu0 0.0
    %257 = vmatpush1.msra.mxu0 %v237
    %258 = vmatprep.subr.mxu0 0.0
    %259 = vmatpush1.msra.mxu0 %v238
    %260 = vmatprep.subr.mxu0 0.0
    %261 = vmatpush1.msra.mxu0 %v239
    %262 = vmatprep.subr.mxu0 0.0
    %263 = vmatpush1.msra.mxu0 %v240
    %264 = vmatprep.subr.mxu0 0.0
    %265 = vmatpush1.msra.mxu0 %v241
    %266 = vmatprep.subr.mxu0 0.0
    %267 = vmatpush1.msra.mxu0 %v242
    %268 = vmatprep.subr.mxu0 0.0
    %269 = vmatpush1.msra.mxu0 %v243
    %270 = vmatprep.subr.mxu0 0.0
    %271 = vmatpush1.msra.mxu0 %v244
    %272 = vmatprep.subr.mxu0 0.0
    %273 = vmatpush1.msra.mxu0 0.0
    %274 = vmatprep.subr.mxu0 0.0
    %275 = vmatpush1.msra.mxu0 0.0
    %276 = vmatprep.subr.mxu0 0.0
    %277 = vmatpush1.msra.mxu0 0.0
    %278 = vmatprep.subr.mxu0 0.0
    %279 = vmatpush1.msra.mxu0 0.0
    %280 = vmatprep.subr.mxu0 0.0
    %281 = vmatpush1.msra.mxu0 0.0
    %282 = vmatprep.subr.mxu0 0.0
    %283 = vmatpush1.msra.mxu0 0.0
    %284 = vmatprep.subr.mxu0 0.0
    %285 = vmatpush1.msra.mxu0 0.0
    %286 = vmatprep.subr.mxu0 0.0
    %287 = vmatpush1.msra.mxu0 0.0
    %288 = vmatprep.subr.mxu0 0.0
    %289 = vmatpush1.msra.mxu0 0.0
    %290 = vmatprep.subr.mxu0 0.0
    %291 = vmatpush1.msra.mxu0 0.0
    %292 = vmatprep.subr.mxu0 0.0
    %293 = vmatpush1.msra.mxu0 0.0
    %294 = vmatprep.subr.mxu0 0.0
    %295 = vmatpush1.msra.mxu0 0.0
    %296 = vmatprep.subr.mxu0 0.0
    %297 = vmatpush1.msra.mxu0 0.0
    %298 = vmatprep.subr.mxu0 0.0
    %299 = vmatpush1.msra.mxu0 0.0
    %300 = vmatprep.subr.mxu0 0.0
    %301 = vmatpush1.msra.mxu0 0.0
    %302 = vmatprep.subr.mxu0 0.0
    %303 = vmatpush1.msra.mxu0 0.0
    %304 = vmatprep.subr.mxu0 0.0
    %305 = vmatpush1.msra.mxu0 0.0
    %306 = vmatprep.subr.mxu0 0.0
    %307 = vmatpush1.msra.mxu0 0.0
    %308 = vmatprep.subr.mxu0 0.0
    %309 = vmatpush1.msra.mxu0 0.0
    %310 = vmatprep.subr.mxu0 0.0
    %311 = vmatpush1.msra.mxu0 0.0
    %312 = vmatprep.subr.mxu0 0.0
    %313 = vmatpush1.msra.mxu0 0.0
    %314 = vmatprep.subr.mxu0 0.0
    %315 = vmatpush1.msra.mxu0 0.0
    %316 = vmatprep.subr.mxu0 0.0
    %317 = vmatpush1.msra.mxu0 0.0
    %318 = vmatprep.subr.mxu0 0.0
    %319 = vmatpush1.msra.mxu0 0.0
    %320 = vmatprep.mubr.f32.mxu0 0.0
    %321 = vmatmul.mubr.f32.gmra.mrb[0].mxu0 %v251
    %v322 = vpop.f32.mrb[0].mxu0
    %v323 = vadd.f32 %v249, %v322
    %v324 = vpop.f32.mrb[0].mxu0
    %325 = vmatprep.mubr.f32.mxu0 0.0
    %326 = vmatmul.mubr.f32.gmra.mrb[0].mxu0 %v254
    %v327 = vpop.f32.mrb[0].mxu0
    %v328 = vadd.f32 %v249, %v327
    %v329 = vpop.f32.mrb[0].mxu0
    %330 = vdwg.mxu0
    %s331 = scalar_lea.vmem [#allocation2], 192
    %v332 = vld [vmem:[%s331] sm:$0xff]
    %v333 = vld [vmem:[%s331 + $0x8] sm:$0xff]
    %v334 = vld [vmem:[%s331 + $0x10] sm:$0xff]
    %v335 = vld [vmem:[%s331 + $0x18] sm:$0xff]
    %v336 = vld [vmem:[%s331 + $0x20] sm:$0xff]
    %v337 = vld [vmem:[%s331 + $0x28] sm:$0xff]
    %v338 = vld [vmem:[%s331 + $0x30] sm:$0xff]
    %v339 = vld [vmem:[%s331 + $0x38] sm:$0xff]
    %v340 = vld [vmem:[%s3 + $0x3] sm:$0x1]
    %v341 = vlaneseq
    %v342 = vshrl.u32 %v341, 7
    %v343 = vsub.s32 0, %v342
    %v344 = vrot.slane %v340, %v343
    %345 = vmatprep.subr.mxu0 0.0
    %346 = vmatpush1.msra.mxu0 %v332
    %347 = vmatprep.subr.mxu0 0.0
    %348 = vmatpush1.msra.mxu0 %v333
    %349 = vmatprep.subr.mxu0 0.0
    %350 = vmatpush1.msra.mxu0 %v334
    %351 = vmatprep.subr.mxu0 0.0
    %352 = vmatpush1.msra.mxu0 %v335
    %353 = vmatprep.subr.mxu0 0.0
    %354 = vmatpush1.msra.mxu0 %v336
    %355 = vmatprep.subr.mxu0 0.0
    %356 = vmatpush1.msra.mxu0 %v337
    %357 = vmatprep.subr.mxu0 0.0
    %358 = vmatpush1.msra.mxu0 %v338
    %359 = vmatprep.subr.mxu0 0.0
    %360 = vmatpush1.msra.mxu0 %v339
    %361 = vmatprep.subr.mxu0 0.0
    %362 = vmatpush1.msra.mxu0 0.0
    %363 = vmatprep.subr.mxu0 0.0
    %364 = vmatpush1.msra.mxu0 0.0
    %365 = vmatprep.subr.mxu0 0.0
    %366 = vmatpush1.msra.mxu0 0.0
    %367 = vmatprep.subr.mxu0 0.0
    %368 = vmatpush1.msra.mxu0 0.0
    %369 = vmatprep.subr.mxu0 0.0
    %370 = vmatpush1.msra.mxu0 0.0
    %371 = vmatprep.subr.mxu0 0.0
    %372 = vmatpush1.msra.mxu0 0.0
    %373 = vmatprep.subr.mxu0 0.0
    %374 = vmatpush1.msra.mxu0 0.0
    %375 = vmatprep.subr.mxu0 0.0
    %376 = vmatpush1.msra.mxu0 0.0
    %377 = vmatprep.subr.mxu0 0.0
    %378 = vmatpush1.msra.mxu0 0.0
    %379 = vmatprep.subr.mxu0 0.0
    %380 = vmatpush1.msra.mxu0 0.0
    %381 = vmatprep.subr.mxu0 0.0
    %382 = vmatpush1.msra.mxu0 0.0
    %383 = vmatprep.subr.mxu0 0.0
    %384 = vmatpush1.msra.mxu0 0.0
    %385 = vmatprep.subr.mxu0 0.0
    %386 = vmatpush1.msra.mxu0 0.0
    %387 = vmatprep.subr.mxu0 0.0
    %388 = vmatpush1.msra.mxu0 0.0
    %389 = vmatprep.subr.mxu0 0.0
    %390 = vmatpush1.msra.mxu0 0.0
    %391 = vmatprep.subr.mxu0 0.0
    %392 = vmatpush1.msra.mxu0 0.0
    %393 = vmatprep.subr.mxu0 0.0
    %394 = vmatpush1.msra.mxu0 0.0
    %395 = vmatprep.subr.mxu0 0.0
    %396 = vmatpush1.msra.mxu0 0.0
    %397 = vmatprep.subr.mxu0 0.0
    %398 = vmatpush1.msra.mxu0 0.0
    %399 = vmatprep.subr.mxu0 0.0
    %400 = vmatpush1.msra.mxu0 0.0
    %401 = vmatprep.subr.mxu0 0.0
    %402 = vmatpush1.msra.mxu0 0.0
    %403 = vmatprep.subr.mxu0 0.0
    %404 = vmatpush1.msra.mxu0 0.0
    %405 = vmatprep.subr.mxu0 0.0
    %406 = vmatpush1.msra.mxu0 0.0
    %407 = vmatprep.subr.mxu0 0.0
    %408 = vmatpush1.msra.mxu0 0.0
    %409 = vmatprep.mubr.f32.mxu0 0.0
    %410 = vmatmul.mubr.f32.gmra.mrb[0].mxu0 %v251
    %v411 = vpop.f32.mrb[0].mxu0
    %v412 = vadd.f32 %v344, %v411
    %v413 = vpop.f32.mrb[0].mxu0
    %414 = vmatprep.mubr.f32.mxu0 0.0
    %415 = vmatmul.mubr.f32.gmra.mrb[0].mxu0 %v254
    %v416 = vpop.f32.mrb[0].mxu0
    %v417 = vadd.f32 %v344, %v416
    %v418 = vpop.f32.mrb[0].mxu0
    %419 = vdwg.mxu0
    %v420 = vlaneseq
    %v421 = vshrl.u32 %v420, 7
    %v422 = vlaneseq
    %v423 = vand.u32 %v422, 127
    %vm424 = vcmp.eq.s32.totalorder %v421, %v423
    %v425 = vsel %vm424, 1, 0
    %v426 = vcvt.s32.f32 %v425
    %v427 = vld [vmem:[%s1] sm:$0xff]
    %v428 = vld [vmem:[%s1 + $0x8] sm:$0xff]
    %vm429 = vcmask 64512
    %v431 = vsel %vm429, %v427, 0
    %v434 = vsel %vm429, %v428, 0
    %436 = vmatprep.subr.mxu0 0.0
    %437 = vmatpush1.msra.mxu0 %v426
    %438 = vmatprep.subr.mxu0 0.0
    %439 = vmatpush1.msra.mxu0 0.0
    %440 = vmatprep.subr.mxu0 0.0
    %441 = vmatpush1.msra.mxu0 0.0
    %442 = vmatprep.subr.mxu0 0.0
    %443 = vmatpush1.msra.mxu0 0.0
    %444 = vmatprep.subr.mxu0 0.0
    %445 = vmatpush1.msra.mxu0 0.0
    %446 = vmatprep.subr.mxu0 0.0
    %447 = vmatpush1.msra.mxu0 0.0
    %448 = vmatprep.subr.mxu0 0.0
    %449 = vmatpush1.msra.mxu0 0.0
    %450 = vmatprep.subr.mxu0 0.0
    %451 = vmatpush1.msra.mxu0 0.0
    %452 = vmatprep.subr.mxu0 0.0
    %453 = vmatpush1.msra.mxu0 0.0
    %454 = vmatprep.subr.mxu0 0.0
    %455 = vmatpush1.msra.mxu0 0.0
    %456 = vmatprep.subr.mxu0 0.0
    %457 = vmatpush1.msra.mxu0 0.0
    %458 = vmatprep.subr.mxu0 0.0
    %459 = vmatpush1.msra.mxu0 0.0
    %460 = vmatprep.subr.mxu0 0.0
    %461 = vmatpush1.msra.mxu0 0.0
    %462 = vmatprep.subr.mxu0 0.0
    %463 = vmatpush1.msra.mxu0 0.0
    %464 = vmatprep.subr.mxu0 0.0
    %465 = vmatpush1.msra.mxu0 0.0
    %466 = vmatprep.subr.mxu0 0.0
    %467 = vmatpush1.msra.mxu0 0.0
    %468 = vmatprep.subr.mxu0 0.0
    %469 = vmatpush1.msra.mxu0 0.0
    %470 = vmatprep.subr.mxu0 0.0
    %471 = vmatpush1.msra.mxu0 0.0
    %472 = vmatprep.subr.mxu0 0.0
    %473 = vmatpush1.msra.mxu0 0.0
    %474 = vmatprep.subr.mxu0 0.0
    %475 = vmatpush1.msra.mxu0 0.0
    %476 = vmatprep.subr.mxu0 0.0
    %477 = vmatpush1.msra.mxu0 0.0
    %478 = vmatprep.subr.mxu0 0.0
    %479 = vmatpush1.msra.mxu0 0.0
    %480 = vmatprep.subr.mxu0 0.0
    %481 = vmatpush1.msra.mxu0 0.0
    %482 = vmatprep.subr.mxu0 0.0
    %483 = vmatpush1.msra.mxu0 0.0
    %484 = vmatprep.subr.mxu0 0.0
    %485 = vmatpush1.msra.mxu0 0.0
    %486 = vmatprep.subr.mxu0 0.0
    %487 = vmatpush1.msra.mxu0 0.0
    %488 = vmatprep.subr.mxu0 0.0
    %489 = vmatpush1.msra.mxu0 0.0
    %490 = vmatprep.subr.mxu0 0.0
    %491 = vmatpush1.msra.mxu0 0.0
    %492 = vmatprep.subr.mxu0 0.0
    %493 = vmatpush1.msra.mxu0 0.0
    %494 = vmatprep.subr.mxu0 0.0
    %495 = vmatpush1.msra.mxu0 0.0
    %496 = vmatprep.subr.mxu0 0.0
    %497 = vmatpush1.msra.mxu0 0.0
    %498 = vmatprep.subr.mxu0 0.0
    %499 = vmatpush1.msra.mxu0 0.0
    %500 = vmatprep.mubr.f32.mxu0 0.0
    %501 = vmatmul.mubr.f32.gmra.mrb[0].mxu0 %v431
    %v502 = vpop.f32.mrb[0].mxu0
    %v503 = vadd.f32 0.0, %v502
    %v504 = vpop.f32.mrb[0].mxu0
    %505 = vmatprep.mubr.f32.mxu0 0.0
    %506 = vmatmul.mubr.f32.gmra.mrb[0].mxu0 %v434
    %v507 = vpop.f32.mrb[0].mxu0
    %v508 = vadd.f32 0.0, %v507
    %v509 = vpop.f32.mrb[0].mxu0
    %510 = vdwg.mxu0
    %v511 = vmul.f32 %v412, 0.5
    %v512 = vmul.f32 %v417, 0.5
    %v513 = vmul.f32 %v511, 1.442695
    %v514 = vpow.pop %v513
    %v515 = vmul.f32 %v512, 1.442695
    %v516 = vpow.pop %v515
    %v517 = vmul.f32 %v503, %v514
    %v518 = vmul.f32 %v508, %v516
    %v519 = vadd.f32 %v323, %v517
    %v520 = vadd.f32 %v328, %v518
    %s521 = scalar_lea.vmem [#allocation2], 256
    %v522 = vld [vmem:[%s521] sm:$0xff]
    %v523 = vld [vmem:[%s521 + $0x8] sm:$0xff]
    %v524 = vld [vmem:[%s521 + $0x10] sm:$0xff]
    %v525 = vld [vmem:[%s521 + $0x18] sm:$0xff]
    %v526 = vld [vmem:[%s521 + $0x20] sm:$0xff]
    %v527 = vld [vmem:[%s521 + $0x28] sm:$0xff]
    %v528 = vld [vmem:[%s521 + $0x30] sm:$0xff]
    %v529 = vld [vmem:[%s521 + $0x38] sm:$0xff]
    %v530 = vld [vmem:[%s3 + $0x4] sm:$0x1]
    %v531 = vlaneseq
    %v532 = vshrl.u32 %v531, 7
    %v533 = vsub.s32 0, %v532
    %v534 = vrot.slane %v530, %v533
    %v536 = vsel %vm47, %v519, 0
    %v539 = vsel %vm47, %v520, 0
    %541 = vmatprep.subr.mxu0 0.0
    %542 = vmatpush1.msra.mxu0 %v522
    %543 = vmatprep.subr.mxu0 0.0
    %544 = vmatpush1.msra.mxu0 %v523
    %545 = vmatprep.subr.mxu0 0.0
    %546 = vmatpush1.msra.mxu0 %v524
    %547 = vmatprep.subr.mxu0 0.0
    %548 = vmatpush1.msra.mxu0 %v525
    %549 = vmatprep.subr.mxu0 0.0
    %550 = vmatpush1.msra.mxu0 %v526
    %551 = vmatprep.subr.mxu0 0.0
    %552 = vmatpush1.msra.mxu0 %v527
    %553 = vmatprep.subr.mxu0 0.0
    %554 = vmatpush1.msra.mxu0 %v528
    %555 = vmatprep.subr.mxu0 0.0
    %556 = vmatpush1.msra.mxu0 %v529
    %557 = vmatprep.subr.mxu0 0.0
    %558 = vmatpush1.msra.mxu0 0.0
    %559 = vmatprep.subr.mxu0 0.0
    %560 = vmatpush1.msra.mxu0 0.0
    %561 = vmatprep.subr.mxu0 0.0
    %562 = vmatpush1.msra.mxu0 0.0
    %563 = vmatprep.subr.mxu0 0.0
    %564 = vmatpush1.msra.mxu0 0.0
    %565 = vmatprep.subr.mxu0 0.0
    %566 = vmatpush1.msra.mxu0 0.0
    %567 = vmatprep.subr.mxu0 0.0
    %568 = vmatpush1.msra.mxu0 0.0
    %569 = vmatprep.subr.mxu0 0.0
    %570 = vmatpush1.msra.mxu0 0.0
    %571 = vmatprep.subr.mxu0 0.0
    %572 = vmatpush1.msra.mxu0 0.0
    %573 = vmatprep.subr.mxu0 0.0
    %574 = vmatpush1.msra.mxu0 0.0
    %575 = vmatprep.subr.mxu0 0.0
    %576 = vmatpush1.msra.mxu0 0.0
    %577 = vmatprep.subr.mxu0 0.0
    %578 = vmatpush1.msra.mxu0 0.0
    %579 = vmatprep.subr.mxu0 0.0
    %580 = vmatpush1.msra.mxu0 0.0
    %581 = vmatprep.subr.mxu0 0.0
    %582 = vmatpush1.msra.mxu0 0.0
    %583 = vmatprep.subr.mxu0 0.0
    %584 = vmatpush1.msra.mxu0 0.0
    %585 = vmatprep.subr.mxu0 0.0
    %586 = vmatpush1.msra.mxu0 0.0
    %587 = vmatprep.subr.mxu0 0.0
    %588 = vmatpush1.msra.mxu0 0.0
    %589 = vmatprep.subr.mxu0 0.0
    %590 = vmatpush1.msra.mxu0 0.0
    %591 = vmatprep.subr.mxu0 0.0
    %592 = vmatpush1.msra.mxu0 0.0
    %593 = vmatprep.subr.mxu0 0.0
    %594 = vmatpush1.msra.mxu0 0.0
    %595 = vmatprep.subr.mxu0 0.0
    %596 = vmatpush1.msra.mxu0 0.0
    %597 = vmatprep.subr.mxu0 0.0
    %598 = vmatpush1.msra.mxu0 0.0
    %599 = vmatprep.subr.mxu0 0.0
    %600 = vmatpush1.msra.mxu0 0.0
    %601 = vmatprep.subr.mxu0 0.0
    %602 = vmatpush1.msra.mxu0 0.0
    %603 = vmatprep.subr.mxu0 0.0
    %604 = vmatpush1.msra.mxu0 0.0
    %605 = vmatprep.mubr.f32.mxu0 0.0
    %606 = vmatmul.mubr.f32.gmra.mrb[0].mxu0 %v536
    %v607 = vpop.f32.mrb[0].mxu0
    %v608 = vadd.f32 %v534, %v607
    %v609 = vpop.f32.mrb[0].mxu0
    %610 = vmatprep.mubr.f32.mxu0 0.0
    %611 = vmatmul.mubr.f32.gmra.mrb[0].mxu0 %v539
    %v612 = vpop.f32.mrb[0].mxu0
    %v613 = vadd.f32 %v534, %v612
    %v614 = vpop.f32.mrb[0].mxu0
    %615 = vdwg.mxu0
    %vm616 = vcmp.ge.f32.partialorder %v608, 0.0
    %vm617 = vcmp.ge.f32.partialorder %v613, 0.0
    %v618 = vmul.f32 %v608, 0.0001
    %v619 = vmul.f32 %v613, 0.0001
    %v620 = vsel %vm616, %v608, %v618
    %v621 = vsel %vm617, %v613, %v619
    %s622 = scalar_lea.vmem [#allocation2], 320
    %v623 = vld [vmem:[%s622] sm:$0xff]
    %v624 = vld [vmem:[%s622 + $0x8] sm:$0xff]
    %v625 = vld [vmem:[%s622 + $0x10] sm:$0xff]
    %v626 = vld [vmem:[%s622 + $0x18] sm:$0xff]
    %v627 = vld [vmem:[%s622 + $0x20] sm:$0xff]
    %v628 = vld [vmem:[%s622 + $0x28] sm:$0xff]
    %v629 = vld [vmem:[%s622 + $0x30] sm:$0xff]
    %v630 = vld [vmem:[%s622 + $0x38] sm:$0xff]
    %v631 = vld [vmem:[%s3 + $0x5] sm:$0x1]
    %v632 = vlaneseq
    %v633 = vshrl.u32 %v632, 7
    %v634 = vsub.s32 0, %v633
    %v635 = vrot.slane %v631, %v634
    %v637 = vsel %vm47, %v620, 0
    %v640 = vsel %vm47, %v621, 0
    %642 = vmatprep.subr.mxu0 0.0
    %643 = vmatpush1.msra.mxu0 %v623
    %644 = vmatprep.subr.mxu0 0.0
    %645 = vmatpush1.msra.mxu0 %v624
    %646 = vmatprep.subr.mxu0 0.0
    %647 = vmatpush1.msra.mxu0 %v625
    %648 = vmatprep.subr.mxu0 0.0
    %649 = vmatpush1.msra.mxu0 %v626
    %650 = vmatprep.subr.mxu0 0.0
    %651 = vmatpush1.msra.mxu0 %v627
    %652 = vmatprep.subr.mxu0 0.0
    %653 = vmatpush1.msra.mxu0 %v628
    %654 = vmatprep.subr.mxu0 0.0
    %655 = vmatpush1.msra.mxu0 %v629
    %656 = vmatprep.subr.mxu0 0.0
    %657 = vmatpush1.msra.mxu0 %v630
    %658 = vmatprep.subr.mxu0 0.0
    %659 = vmatpush1.msra.mxu0 0.0
    %660 = vmatprep.subr.mxu0 0.0
    %661 = vmatpush1.msra.mxu0 0.0
    %662 = vmatprep.subr.mxu0 0.0
    %663 = vmatpush1.msra.mxu0 0.0
    %664 = vmatprep.subr.mxu0 0.0
    %665 = vmatpush1.msra.mxu0 0.0
    %666 = vmatprep.subr.mxu0 0.0
    %667 = vmatpush1.msra.mxu0 0.0
    %668 = vmatprep.subr.mxu0 0.0
    %669 = vmatpush1.msra.mxu0 0.0
    %670 = vmatprep.subr.mxu0 0.0
    %671 = vmatpush1.msra.mxu0 0.0
    %672 = vmatprep.subr.mxu0 0.0
    %673 = vmatpush1.msra.mxu0 0.0
    %674 = vmatprep.subr.mxu0 0.0
    %675 = vmatpush1.msra.mxu0 0.0
    %676 = vmatprep.subr.mxu0 0.0
    %677 = vmatpush1.msra.mxu0 0.0
    %678 = vmatprep.subr.mxu0 0.0
    %679 = vmatpush1.msra.mxu0 0.0
    %680 = vmatprep.subr.mxu0 0.0
    %681 = vmatpush1.msra.mxu0 0.0
    %682 = vmatprep.subr.mxu0 0.0
    %683 = vmatpush1.msra.mxu0 0.0
    %684 = vmatprep.subr.mxu0 0.0
    %685 = vmatpush1.msra.mxu0 0.0
    %686 = vmatprep.subr.mxu0 0.0
    %687 = vmatpush1.msra.mxu0 0.0
    %688 = vmatprep.subr.mxu0 0.0
    %689 = vmatpush1.msra.mxu0 0.0
    %690 = vmatprep.subr.mxu0 0.0
    %691 = vmatpush1.msra.mxu0 0.0
    %692 = vmatprep.subr.mxu0 0.0
    %693 = vmatpush1.msra.mxu0 0.0
    %694 = vmatprep.subr.mxu0 0.0
    %695 = vmatpush1.msra.mxu0 0.0
    %696 = vmatprep.subr.mxu0 0.0
    %697 = vmatpush1.msra.mxu0 0.0
    %698 = vmatprep.subr.mxu0 0.0
    %699 = vmatpush1.msra.mxu0 0.0
    %700 = vmatprep.subr.mxu0 0.0
    %701 = vmatpush1.msra.mxu0 0.0
    %702 = vmatprep.subr.mxu0 0.0
    %703 = vmatpush1.msra.mxu0 0.0
    %704 = vmatprep.subr.mxu0 0.0
    %705 = vmatpush1.msra.mxu0 0.0
    %706 = vmatprep.mubr.f32.mxu0 0.0
    %707 = vmatmul.mubr.f32.gmra.mrb[0].mxu0 %v637
    %v708 = vpop.f32.mrb[0].mxu0
    %v709 = vadd.f32 %v635, %v708
    %v710 = vpop.f32.mrb[0].mxu0
    %711 = vmatprep.mubr.f32.mxu0 0.0
    %712 = vmatmul.mubr.f32.gmra.mrb[0].mxu0 %v640
    %v713 = vpop.f32.mrb[0].mxu0
    %v714 = vadd.f32 %v635, %v713
    %v715 = vpop.f32.mrb[0].mxu0
    %716 = vdwg.mxu0
    %vm717 = vcmp.ge.f32.partialorder %v709, 0.0
    %vm718 = vcmp.ge.f32.partialorder %v714, 0.0
    %v719 = vmul.f32 %v709, 0.0001
    %v720 = vmul.f32 %v714, 0.0001
    %v721 = vsel %vm717, %v709, %v719
    %v722 = vsel %vm718, %v714, %v720
    %s723 = scalar_lea.vmem [#allocation2], 384
    %v724 = vld [vmem:[%s723] sm:$0xff]
    %v725 = vld [vmem:[%s723 + $0x8] sm:$0xff]
    %v726 = vld [vmem:[%s723 + $0x10] sm:$0xff]
    %v727 = vld [vmem:[%s723 + $0x18] sm:$0xff]
    %v728 = vld [vmem:[%s723 + $0x20] sm:$0xff]
    %v729 = vld [vmem:[%s723 + $0x28] sm:$0xff]
    %v730 = vld [vmem:[%s723 + $0x30] sm:$0xff]
    %v731 = vld [vmem:[%s723 + $0x38] sm:$0xff]
    %v732 = vld [vmem:[%s3 + $0x6] sm:$0x1]
    %v733 = vlaneseq
    %v734 = vshrl.u32 %v733, 7
    %v735 = vsub.s32 0, %v734
    %v736 = vrot.slane %v732, %v735
    %v738 = vsel %vm47, %v721, 0
    %v741 = vsel %vm47, %v722, 0
    %743 = vmatprep.subr.mxu0 0.0
    %744 = vmatpush1.msra.mxu0 %v724
    %745 = vmatprep.subr.mxu0 0.0
    %746 = vmatpush1.msra.mxu0 %v725
    %747 = vmatprep.subr.mxu0 0.0
    %748 = vmatpush1.msra.mxu0 %v726
    %749 = vmatprep.subr.mxu0 0.0
    %750 = vmatpush1.msra.mxu0 %v727
    %751 = vmatprep.subr.mxu0 0.0
    %752 = vmatpush1.msra.mxu0 %v728
    %753 = vmatprep.subr.mxu0 0.0
    %754 = vmatpush1.msra.mxu0 %v729
    %755 = vmatprep.subr.mxu0 0.0
    %756 = vmatpush1.msra.mxu0 %v730
    %757 = vmatprep.subr.mxu0 0.0
    %758 = vmatpush1.msra.mxu0 %v731
    %759 = vmatprep.subr.mxu0 0.0
    %760 = vmatpush1.msra.mxu0 0.0
    %761 = vmatprep.subr.mxu0 0.0
    %762 = vmatpush1.msra.mxu0 0.0
    %763 = vmatprep.subr.mxu0 0.0
    %764 = vmatpush1.msra.mxu0 0.0
    %765 = vmatprep.subr.mxu0 0.0
    %766 = vmatpush1.msra.mxu0 0.0
    %767 = vmatprep.subr.mxu0 0.0
    %768 = vmatpush1.msra.mxu0 0.0
    %769 = vmatprep.subr.mxu0 0.0
    %770 = vmatpush1.msra.mxu0 0.0
    %771 = vmatprep.subr.mxu0 0.0
    %772 = vmatpush1.msra.mxu0 0.0
    %773 = vmatprep.subr.mxu0 0.0
    %774 = vmatpush1.msra.mxu0 0.0
    %775 = vmatprep.subr.mxu0 0.0
    %776 = vmatpush1.msra.mxu0 0.0
    %777 = vmatprep.subr.mxu0 0.0
    %778 = vmatpush1.msra.mxu0 0.0
    %779 = vmatprep.subr.mxu0 0.0
    %780 = vmatpush1.msra.mxu0 0.0
    %781 = vmatprep.subr.mxu0 0.0
    %782 = vmatpush1.msra.mxu0 0.0
    %783 = vmatprep.subr.mxu0 0.0
    %784 = vmatpush1.msra.mxu0 0.0
    %785 = vmatprep.subr.mxu0 0.0
    %786 = vmatpush1.msra.mxu0 0.0
    %787 = vmatprep.subr.mxu0 0.0
    %788 = vmatpush1.msra.mxu0 0.0
    %789 = vmatprep.subr.mxu0 0.0
    %790 = vmatpush1.msra.mxu0 0.0
    %791 = vmatprep.subr.mxu0 0.0
    %792 = vmatpush1.msra.mxu0 0.0
    %793 = vmatprep.subr.mxu0 0.0
    %794 = vmatpush1.msra.mxu0 0.0
    %795 = vmatprep.subr.mxu0 0.0
    %796 = vmatpush1.msra.mxu0 0.0
    %797 = vmatprep.subr.mxu0 0.0
    %798 = vmatpush1.msra.mxu0 0.0
    %799 = vmatprep.subr.mxu0 0.0
    %800 = vmatpush1.msra.mxu0 0.0
    %801 = vmatprep.subr.mxu0 0.0
    %802 = vmatpush1.msra.mxu0 0.0
    %803 = vmatprep.subr.mxu0 0.0
    %804 = vmatpush1.msra.mxu0 0.0
    %805 = vmatprep.subr.mxu0 0.0
    %806 = vmatpush1.msra.mxu0 0.0
    %807 = vmatprep.mubr.f32.mxu0 0.0
    %808 = vmatmul.mubr.f32.gmra.mrb[0].mxu0 %v738
    %v809 = vpop.f32.mrb[0].mxu0
    %v810 = vadd.f32 %v736, %v809
    %v811 = vpop.f32.mrb[0].mxu0
    %812 = vmatprep.mubr.f32.mxu0 0.0
    %813 = vmatmul.mubr.f32.gmra.mrb[0].mxu0 %v741
    %v814 = vpop.f32.mrb[0].mxu0
    %v815 = vadd.f32 %v736, %v814
    %v816 = vpop.f32.mrb[0].mxu0
    %817 = vdwg.mxu0
    %v818 = vsub.f32 0.0, %v810
    %v819 = vsub.f32 0.0, %v815
    %v820 = vmul.f32 %v818, 1.442695
    %v821 = vpow.pop %v820
    %v822 = vmul.f32 %v819, 1.442695
    %v823 = vpow.pop %v822
    %v824 = vadd.f32 %v821, 1.0
    %v825 = vadd.f32 %v823, 1.0
    %v826 = vrcp.pop %v824
    %v827 = vmul.f32 1.0, %v826
    %v828 = vrcp.pop %v825
    %v829 = vmul.f32 1.0, %v828
    %830 = vst.msk [vmem:[#allocation5] sm:$0xff] %vm47, %v827
    %831 = vst.msk [vmem:[#allocation5 + $0x8] sm:$0xff] %vm47, %v829
    // Predicated region
    $region22: #{tpu_custom_call.1} parent=1 // pred_check
      _
    $region23: #{tpu_custom_call.1} parent=1 // pred_check_branch
      %833 = sbr.rel (0) target = $region25
    $region24: #{tpu_custom_call.1} parent=1 // pred_region
      %s835 = ssub.s32 256, 256
      %836 = vsyncadd [#allocation4], %s835
      %s837 = sshll.u32 [#allocation5], 4
      %s838 = int_to_ptr.vmem [resolvable:$true] %s837
      %843 = dma.vmem_to_hbm [thread:$0]  %s838, 256, %s4, [#allocation4], 128, 128, 8
    $region25: #{tpu_custom_call.1} parent=1 // pred_fallthru
      _
    // Predicated region
    $region26: #{tpu_custom_call.1} parent=1 // pred_check
      _
    $region27: #{tpu_custom_call.1} parent=1 // pred_check_branch
      %845 = sbr.rel (0) target = $region29
    $region28: #{tpu_custom_call.1} parent=1 // pred_region
      %846 = dma.done [#allocation4], 256
    $region29: #{tpu_custom_call.1} parent=1 // pred_fallthru
      _
    %847 = vsyncpa [#allocation3], 1
    %848 = vsyncpa [#allocation4], 1

</llo_original>
